<compile_context>
chip_gen: v5e
topology: v5e:2x2
jax: 0.10.0
libtpu: 0.0.40
codegen_flags: <defaults>
</compile_context>

<pallas_src>
import jax
import jax.numpy as jnp
from jax import lax
from jax.experimental import pallas as pl
from jax.experimental.pallas import tpu as pltpu


# ---------------------------------------------------------------------------
# Kernel
# ---------------------------------------------------------------------------
def _mlp_kernel(x_ref,
                w1_ref, b1_ref,
                w2_ref, b2_ref,
                w3_ref, b3_ref,
                w4_ref, b4_ref,
                o_ref):
    """Fused 4-layer MLP forward for one batch tile, in (features, batch) form.

    Eval-mode BatchNorm has been pre-folded into the following Linear by the
    wrapper, so the body is (Linear -> LeakyReLU) x 3 -> Linear.  Weights are
    PyTorch (out_features, in_features) layout; all activations and the output
    block keep batch on the lane axis, so stores are never masked even though
    the feature widths (16/32/64/8) are far below 128.
    """
    neg = jnp.float32(0.02)
    wdt = w1_ref.dtype   # matmul operand dtype (f32 or bf16); accumulation is f32

    # Layer 1: (hid, in) contracted with (TB, in) over `in` -> (hid, TB).
    # trans_b matmul, so the x tile is consumed in its natural (TB, in) layout.
    h = lax.dot_general(w1_ref[...], x_ref[...],
                        dimension_numbers=(((1,), (1,)), ((), ())),
                        preferred_element_type=jnp.float32) + b1_ref[...]
    h = jnp.where(h > 0, h, neg * h)

    h = jnp.dot(w2_ref[...], h.astype(wdt),
                preferred_element_type=jnp.float32) + b2_ref[...]
    h = jnp.where(h > 0, h, neg * h)

    h = jnp.dot(w3_ref[...], h.astype(wdt),
                preferred_element_type=jnp.float32) + b3_ref[...]
    h = jnp.where(h > 0, h, neg * h)

    y = jnp.dot(w4_ref[...], h.astype(wdt),
                preferred_element_type=jnp.float32) + b4_ref[...]
    o_ref[...] = y.astype(o_ref.dtype)          # (out_f, TB) lane-dense store


# ---------------------------------------------------------------------------
# Hardware queries (best-effort, with safe fallbacks)
# ---------------------------------------------------------------------------
def _vmem_capacity_bytes():
    try:
        info = pltpu.get_tpu_info()
        v = getattr(info, "vmem_capacity_bytes", None)
        if v:
            return int(v)
    except Exception:
        pass
    return 64 * 1024 * 1024    # conservative default (v7x per-TC VMEM)


def _tensorcores_per_device():
    try:
        info = pltpu.get_tpu_info()
        for name in ("num_cores", "core_count", "num_tensorcores",
                     "tensorcores_per_chip"):
            v = getattr(info, name, None)
            if v:
                return int(v)
    except Exception:
        pass
    try:
        if "v7" in jax.devices()[0].device_kind.lower():
            return 2
    except Exception:
        pass
    return 1


# ---------------------------------------------------------------------------
# Tiling / VMEM budgeting
# ---------------------------------------------------------------------------
def _tile_candidates(B, align, cap):
    """Multiples of `align` that divide B, descending, capped at `cap`."""
    out = []
    t = (min(cap, B) // align) * align
    while t >= align:
        if B % t == 0:
            out.append(t)
        t -= align
    return out


def _choose_batch_tile(B, *, max_tile=4096, num_cores=1):
    """Pick the per-step batch tile.

    Live footprint is only ~0.7 KiB/row (f32), so big tiles are cheap and the
    per-step pipeline overhead (~0.35 us) is what matters:
      * single-TC chips (v5e/v6e): one full-batch step when B <= max_tile
        (the grid is a sequential loop there; splitting only adds overhead);
      * v7x (2 TCs): >= 2 steps with an even step count so both cores get
        equal work.
    When tiling, tiles are multiples of 128 so the transposed (out_f, tile)
    output block is lane-dense; a full-extent (tile == B) block is always
    legal as a fallback.
    """
    if num_cores <= 1:
        if B <= max_tile:
            return B
        cands = _tile_candidates(B, 128, max_tile)
        return cands[0] if cands else B
    cands = _tile_candidates(B, 128, min(max_tile, B // 2))
    for t in cands:                       # prefer an even number of grid steps
        if (B // t) % 2 == 0:
            return t
    if cands:
        return cands[0]
    return B                              # single full-extent step


def _vmem_limit_bytes(batch_tile, param_arrays, in_f, out_f, x_itemsize):
    param_bytes = sum(int(a.size) * a.dtype.itemsize for a in param_arrays)
    feat = sum(int(a.shape[0]) for a in param_arrays[1::2])   # hid + 2hid + hid + out
    act_bytes = batch_tile * feat * 4                          # live f32 activations
    io_bytes = 2 * batch_tile * (in_f * x_itemsize + out_f * 4)  # dbl-buffered tiles
    est = act_bytes + io_bytes + 2 * param_bytes
    cap = int(0.8 * _vmem_capacity_bytes())    # never exceed physical VMEM (v7x: 64 MiB)
    return int(min(max(32 * 1024 * 1024, 4 * est), cap))


# ---------------------------------------------------------------------------
# Parameter folding (call once, reuse)
# ---------------------------------------------------------------------------
def fold_params(params, *, eps=1e-5, compute_dtype=jnp.float32):
    """Fold eval-mode BatchNorm_n into Linear_{n+1} (exact in f32) and reshape
    biases into (F, 1) columns for the transposed kernel.

    With PyTorch-layout W (out, in):  W' = W * s[None, :],  b' = b + W @ t,
    where s = gamma / sqrt(var + eps), t = beta - mean * s.

    Call once and cache: this is parameter-only, call-invariant work.
    """
    eps = jnp.float32(eps)

    def bn_scale_shift(n):
        s = params[f"g{n}"] / jnp.sqrt(params[f"rv{n}"] + eps)
        t = params[f"be{n}"] - params[f"rm{n}"] * s
        return s, t

    s1, t1 = bn_scale_shift(1)
    s2, t2 = bn_scale_shift(2)
    s3, t3 = bn_scale_shift(3)

    w1, b1 = params["w1"], params["b1"]
    w2 = params["w2"] * s1[None, :]
    b2 = params["b2"] + params["w2"] @ t1
    w3 = params["w3"] * s2[None, :]
    b3 = params["b3"] + params["w3"] @ t2
    w4 = params["w4"] * s3[None, :]
    b4 = params["b4"] + params["w4"] @ t3

    folded = {}
    for n, (w, b) in enumerate([(w1, b1), (w2, b2), (w3, b3), (w4, b4)], start=1):
        folded[f"w{n}"] = w.astype(compute_dtype)            # matmul operand dtype
        folded[f"b{n}"] = b[:, None].astype(jnp.float32)     # f32 (F, 1) column bias
    return folded


# ---------------------------------------------------------------------------
# Forward wrapper
# ---------------------------------------------------------------------------
def mlp_forward(x, folded, *, batch_tile=None, max_tile=4096,
                transposed_output=False):
    """x: (B, in_f). folded: output of fold_params().  Returns (B, out_f),
    or the kernel's native lane-dense (out_f, B) if transposed_output=True."""
    w1, b1 = folded["w1"], folded["b1"]
    w2, b2 = folded["w2"], folded["b2"]
    w3, b3 = folded["w3"], folded["b3"]
    w4, b4 = folded["w4"], folded["b4"]

    B, in_f = x.shape
    out_f = w4.shape[0]
    assert w1.shape[1] == in_f

    # Stream x in the folded-weight dtype (bf16 halves the dominant HBM read).
    if x.dtype != w1.dtype:
        x = x.astype(w1.dtype)

    if batch_tile is None:
        batch_tile = _choose_batch_tile(
            B, max_tile=max_tile, num_cores=_tensorcores_per_device())
    assert B % batch_tile == 0, "batch must be divisible by batch_tile"
    assert batch_tile == B or batch_tile % 128 == 0, (
        "batch_tile must be a multiple of 128 (lane-dense output) or cover "
        "the whole batch")

    grid = (B // batch_tile,)

    def const(a):
        # Same whole-array block every grid step -> fetched once, never
        # re-streamed across the batch grid.
        return pl.BlockSpec(a.shape, lambda i: (0, 0))

    in_specs = [
        pl.BlockSpec((batch_tile, in_f), lambda i: (i, 0)),   # x tile
        const(w1), const(b1),
        const(w2), const(b2),
        const(w3), const(b3),
        const(w4), const(b4),
    ]
    # Lane-dense output: batch on the 128-lane axis -> unmasked stores.
    out_spec = pl.BlockSpec((out_f, batch_tile), lambda i: (0, i))

    vmem_limit = _vmem_limit_bytes(
        batch_tile, (w1, b1, w2, b2, w3, b3, w4, b4), in_f, out_f,
        x_itemsize=x.dtype.itemsize)

    out_t = pl.pallas_call(
        _mlp_kernel,
        out_shape=jax.ShapeDtypeStruct((out_f, B), jnp.float32),
        grid=grid,
        in_specs=in_specs,
        out_specs=out_spec,
        compiler_params=pltpu.CompilerParams(
            dimension_semantics=("parallel",),
            vmem_limit_bytes=vmem_limit,
        ),
    )(x, w1, b1, w2, b2, w3, b3, w4, b4)

    if transposed_output:
        return out_t
    # (out_f, B) -> (B, out_f): a tiny XLA transpose, far cheaper than per-row
    # masked stores inside the kernel.
    return out_t.T


# ---------------------------------------------------------------------------
# Deterministic params + pure-JAX reference (PyTorch eval-mode semantics)
# ---------------------------------------------------------------------------
def init_params(key, in_f, hid_f, out_f):
    """Linear i: weight (out_features, in_features) [PyTorch layout], bias (out,).
    BatchNorm1d i: gamma/beta/running_mean/running_var (features,)."""
    hid2 = hid_f * 2
    dims = [(in_f, hid_f), (hid_f, hid2), (hid2, hid_f), (hid_f, out_f)]
    keys = jax.random.split(key, 8)
    p = {}
    for n, (fi, fo) in enumerate(dims, start=1):
        bound = 1.0 / jnp.sqrt(jnp.float32(fi))
        p[f"w{n}"] = jax.random.uniform(keys[2 * (n - 1)], (fo, fi),
                                        jnp.float32, -bound, bound)
        p[f"b{n}"] = jax.random.uniform(keys[2 * (n - 1) + 1], (fo,),
                                        jnp.float32, -bound, bound)
    for n, f in [(1, hid_f), (2, hid2), (3, hid_f)]:
        idx = jnp.arange(f, dtype=jnp.float32)
        p[f"g{n}"] = 1.0 + 0.01 * idx                 # gamma
        p[f"be{n}"] = 0.05 * jnp.sin(idx)             # beta
        p[f"rm{n}"] = 0.02 * jnp.cos(idx)             # running_mean
        p[f"rv{n}"] = 1.0 + 0.1 * (idx % 3)           # running_var
    return p


def mlp_reference(x, params):
    """Pure-JAX reference (eval-mode PyTorch semantics, un-folded BN)."""
    eps = 1e-5
    h = x
    for n in (1, 2, 3):
        h = h @ params[f"w{n}"].T + params[f"b{n}"]
        h = jnp.where(h > 0, h, 0.02 * h)
        scale = params[f"g{n}"] / jnp.sqrt(params[f"rv{n}"] + eps)
        h = (h - params[f"rm{n}"]) * scale + params[f"be{n}"]
        # dropout: identity in eval
    return h @ params["w4"].T + params["b4"]


if __name__ == "__main__":
    # Small shapes consistent with the module: Mlp(in_f=16, hid_f=32, out_f=8)
    # on a batch of 256 rows.
    B, in_f, hid_f, out_f = 256, 16, 32, 8

    key = jax.random.PRNGKey(0)
    kx, kp = jax.random.split(key)
    x = jax.random.normal(kx, (B, in_f), jnp.float32)
    params = init_params(kp, in_f, hid_f, out_f)
    ref = mlp_reference(x, params)

    # f32 path: BN fold is exact, so the tolerance stays tight.
    folded = fold_params(params)                       # folded once, reused
    fwd = jax.jit(lambda xx: mlp_forward(xx, folded))
    out = jax.block_until_ready(fwd(x))
    assert out.shape == (B, out_f)
    assert jnp.allclose(out, ref, atol=1e-4, rtol=1e-4), "f32 mismatch vs reference"

    # bf16 streaming path (x / weights bf16, f32 accumulation & biases).
    folded16 = fold_params(params, compute_dtype=jnp.bfloat16)
    fwd16 = jax.jit(lambda xx: mlp_forward(xx, folded16))
    out16 = jax.block_until_ready(fwd16(x))
    assert out16.shape == (B, out_f)
    assert jnp.allclose(out16, ref, atol=5e-2, rtol=5e-2), "bf16 mismatch vs reference"

    print("KERNEL_OK")
</pallas_src>

<mosaic_0001>
module attributes {stable_mosaic.version = 11 : i64} {
  func.func @_mlp_kernel(%arg0: i32, %arg1: memref<256x16xf32, #tpu.memory_space<vmem>>, %arg2: memref<32x16xf32, #tpu.memory_space<vmem>>, %arg3: memref<32x1xf32, #tpu.memory_space<vmem>>, %arg4: memref<64x32xf32, #tpu.memory_space<vmem>>, %arg5: memref<64x1xf32, #tpu.memory_space<vmem>>, %arg6: memref<32x64xf32, #tpu.memory_space<vmem>>, %arg7: memref<32x1xf32, #tpu.memory_space<vmem>>, %arg8: memref<8x32xf32, #tpu.memory_space<vmem>>, %arg9: memref<8x1xf32, #tpu.memory_space<vmem>>, %arg10: memref<8x256xf32, #tpu.memory_space<vmem>>) attributes {dimension_semantics = [#tpu.dimension_semantics<parallel>], iteration_bounds = array<i64: 1>, scalar_prefetch = 0 : i64, scratch_operands = 0 : i64, tpu.core_type = #tpu.core_type<tc>, window_params = [{transform_indices = @transform_0, window_bounds = array<i64: 256, 16>}, {pipeline_mode = #tpu.pipeline_mode<synchronous>, transform_indices = @transform_1, window_bounds = array<i64: 32, 16>}, {pipeline_mode = #tpu.pipeline_mode<synchronous>, transform_indices = @transform_2, window_bounds = array<i64: 32, 1>}, {pipeline_mode = #tpu.pipeline_mode<synchronous>, transform_indices = @transform_3, window_bounds = array<i64: 64, 32>}, {pipeline_mode = #tpu.pipeline_mode<synchronous>, transform_indices = @transform_4, window_bounds = array<i64: 64, 1>}, {pipeline_mode = #tpu.pipeline_mode<synchronous>, transform_indices = @transform_5, window_bounds = array<i64: 32, 64>}, {pipeline_mode = #tpu.pipeline_mode<synchronous>, transform_indices = @transform_6, window_bounds = array<i64: 32, 1>}, {pipeline_mode = #tpu.pipeline_mode<synchronous>, transform_indices = @transform_7, window_bounds = array<i64: 8, 32>}, {pipeline_mode = #tpu.pipeline_mode<synchronous>, transform_indices = @transform_8, window_bounds = array<i64: 8, 1>}, {transform_indices = @transform_9, window_bounds = array<i64: 8, 256>}]} {
    %c0 = arith.constant 0 : index
    %c0_0 = arith.constant 0 : index
    %0 = vector.load %arg2[%c0, %c0_0] : memref<32x16xf32, #tpu.memory_space<vmem>>, vector<32x16xf32>
    %c0_1 = arith.constant 0 : index
    %c0_2 = arith.constant 0 : index
    %1 = vector.load %arg1[%c0_1, %c0_2] : memref<256x16xf32, #tpu.memory_space<vmem>>, vector<256x16xf32>
    %cst = arith.constant dense<0.000000e+00> : vector<32x256xf32>
    %2 = tpu.matmul %0, %1, %cst {dimension_numbers = #tpu.dot_dimension_numbers<[1], [1], [0], [0], [0, 0, 1, 0], [], []>} : vector<32x16xf32>, vector<256x16xf32>, vector<32x256xf32> -> vector<32x256xf32>
    %c0_3 = arith.constant 0 : index
    %c0_4 = arith.constant 0 : index
    %3 = vector.load %arg3[%c0_3, %c0_4] : memref<32x1xf32, #tpu.memory_space<vmem>>, vector<32x1xf32>
    %4 = vector.broadcast %3 : vector<32x1xf32> to vector<32x256xf32>
    %5 = arith.addf %2, %4 : vector<32x256xf32>
    %cst_5 = arith.constant 0.000000e+00 : f32
    %6 = vector.broadcast %cst_5 : f32 to vector<32x256xf32>
    %7 = arith.cmpf ogt, %5, %6 : vector<32x256xf32>
    %cst_6 = arith.constant 2.000000e-02 : f32
    %8 = vector.broadcast %cst_6 : f32 to vector<32x256xf32>
    %9 = arith.mulf %8, %5 : vector<32x256xf32>
    %10 = arith.select %7, %5, %9 : vector<32x256xi1>, vector<32x256xf32>
    %c0_7 = arith.constant 0 : index
    %c0_8 = arith.constant 0 : index
    %11 = vector.load %arg4[%c0_7, %c0_8] : memref<64x32xf32, #tpu.memory_space<vmem>>, vector<64x32xf32>
    %cst_9 = arith.constant dense<0.000000e+00> : vector<64x256xf32>
    %12 = tpu.matmul %11, %10, %cst_9 {dimension_numbers = #tpu.dot_dimension_numbers<[1], [0], [0], [1], [0, 0, 1, 1], [], []>} : vector<64x32xf32>, vector<32x256xf32>, vector<64x256xf32> -> vector<64x256xf32>
    %c0_10 = arith.constant 0 : index
    %c0_11 = arith.constant 0 : index
    %13 = vector.load %arg5[%c0_10, %c0_11] : memref<64x1xf32, #tpu.memory_space<vmem>>, vector<64x1xf32>
    %14 = vector.broadcast %13 : vector<64x1xf32> to vector<64x256xf32>
    %15 = arith.addf %12, %14 : vector<64x256xf32>
    %cst_12 = arith.constant 0.000000e+00 : f32
    %16 = vector.broadcast %cst_12 : f32 to vector<64x256xf32>
    %17 = arith.cmpf ogt, %15, %16 : vector<64x256xf32>
    %cst_13 = arith.constant 2.000000e-02 : f32
    %18 = vector.broadcast %cst_13 : f32 to vector<64x256xf32>
    %19 = arith.mulf %18, %15 : vector<64x256xf32>
    %20 = arith.select %17, %15, %19 : vector<64x256xi1>, vector<64x256xf32>
    %c0_14 = arith.constant 0 : index
    %c0_15 = arith.constant 0 : index
    %21 = vector.load %arg6[%c0_14, %c0_15] : memref<32x64xf32, #tpu.memory_space<vmem>>, vector<32x64xf32>
    %cst_16 = arith.constant dense<0.000000e+00> : vector<32x256xf32>
    %22 = tpu.matmul %21, %20, %cst_16 {dimension_numbers = #tpu.dot_dimension_numbers<[1], [0], [0], [1], [0, 0, 1, 1], [], []>} : vector<32x64xf32>, vector<64x256xf32>, vector<32x256xf32> -> vector<32x256xf32>
    %c0_17 = arith.constant 0 : index
    %c0_18 = arith.constant 0 : index
    %23 = vector.load %arg7[%c0_17, %c0_18] : memref<32x1xf32, #tpu.memory_space<vmem>>, vector<32x1xf32>
    %24 = vector.broadcast %23 : vector<32x1xf32> to vector<32x256xf32>
    %25 = arith.addf %22, %24 : vector<32x256xf32>
    %cst_19 = arith.constant 0.000000e+00 : f32
    %26 = vector.broadcast %cst_19 : f32 to vector<32x256xf32>
    %27 = arith.cmpf ogt, %25, %26 : vector<32x256xf32>
    %cst_20 = arith.constant 2.000000e-02 : f32
    %28 = vector.broadcast %cst_20 : f32 to vector<32x256xf32>
    %29 = arith.mulf %28, %25 : vector<32x256xf32>
    %30 = arith.select %27, %25, %29 : vector<32x256xi1>, vector<32x256xf32>
    %c0_21 = arith.constant 0 : index
    %c0_22 = arith.constant 0 : index
    %31 = vector.load %arg8[%c0_21, %c0_22] : memref<8x32xf32, #tpu.memory_space<vmem>>, vector<8x32xf32>
    %cst_23 = arith.constant dense<0.000000e+00> : vector<8x256xf32>
    %32 = tpu.matmul %31, %30, %cst_23 {dimension_numbers = #tpu.dot_dimension_numbers<[1], [0], [0], [1], [0, 0, 1, 1], [], []>} : vector<8x32xf32>, vector<32x256xf32>, vector<8x256xf32> -> vector<8x256xf32>
    %c0_24 = arith.constant 0 : index
    %c0_25 = arith.constant 0 : index
    %33 = vector.load %arg9[%c0_24, %c0_25] : memref<8x1xf32, #tpu.memory_space<vmem>>, vector<8x1xf32>
    %34 = vector.broadcast %33 : vector<8x1xf32> to vector<8x256xf32>
    %35 = arith.addf %32, %34 : vector<8x256xf32>
    %c0_26 = arith.constant 0 : index
    %c0_27 = arith.constant 0 : index
    %36 = vector.load %arg10[%c0_26, %c0_27] : memref<8x256xf32, #tpu.memory_space<vmem>>, vector<8x256xf32>
    tpu.vector_store %arg10[%c0_26, %c0_27], %35 {strides = array<i32>} : memref<8x256xf32, #tpu.memory_space<vmem>>, vector<8x256xf32>,
    return
  }
  func.func @transform_0(%arg0: i32) -> (i32, i32) {
    %c0_i32 = arith.constant 0 : i32
    %c0_i32_0 = arith.constant 0 : i32
    return %arg0, %c0_i32 : i32, i32
  }
  func.func @transform_1(%arg0: i32) -> (i32, i32) {
    %c0_i32 = arith.constant 0 : i32
    %c0_i32_0 = arith.constant 0 : i32
    %c0_i32_1 = arith.constant 0 : i32
    return %c0_i32, %c0_i32_0 : i32, i32
  }
  func.func @transform_2(%arg0: i32) -> (i32, i32) {
    %c0_i32 = arith.constant 0 : i32
    %c0_i32_0 = arith.constant 0 : i32
    %c0_i32_1 = arith.constant 0 : i32
    return %c0_i32, %c0_i32_0 : i32, i32
  }
  func.func @transform_3(%arg0: i32) -> (i32, i32) {
    %c0_i32 = arith.constant 0 : i32
    %c0_i32_0 = arith.constant 0 : i32
    %c0_i32_1 = arith.constant 0 : i32
    return %c0_i32, %c0_i32_0 : i32, i32
  }
  func.func @transform_4(%arg0: i32) -> (i32, i32) {
    %c0_i32 = arith.constant 0 : i32
    %c0_i32_0 = arith.constant 0 : i32
    %c0_i32_1 = arith.constant 0 : i32
    return %c0_i32, %c0_i32_0 : i32, i32
  }
  func.func @transform_5(%arg0: i32) -> (i32, i32) {
    %c0_i32 = arith.constant 0 : i32
    %c0_i32_0 = arith.constant 0 : i32
    %c0_i32_1 = arith.constant 0 : i32
    return %c0_i32, %c0_i32_0 : i32, i32
  }
  func.func @transform_6(%arg0: i32) -> (i32, i32) {
    %c0_i32 = arith.constant 0 : i32
    %c0_i32_0 = arith.constant 0 : i32
    %c0_i32_1 = arith.constant 0 : i32
    return %c0_i32, %c0_i32_0 : i32, i32
  }
  func.func @transform_7(%arg0: i32) -> (i32, i32) {
    %c0_i32 = arith.constant 0 : i32
    %c0_i32_0 = arith.constant 0 : i32
    %c0_i32_1 = arith.constant 0 : i32
    return %c0_i32, %c0_i32_0 : i32, i32
  }
  func.func @transform_8(%arg0: i32) -> (i32, i32) {
    %c0_i32 = arith.constant 0 : i32
    %c0_i32_0 = arith.constant 0 : i32
    %c0_i32_1 = arith.constant 0 : i32
    return %c0_i32, %c0_i32_0 : i32, i32
  }
  func.func @transform_9(%arg0: i32) -> (i32, i32) {
    %c0_i32 = arith.constant 0 : i32
    %c0_i32_0 = arith.constant 0 : i32
    return %c0_i32, %arg0 : i32, i32
  }
}

</mosaic_0001>

<llo_original>
// kernel: _lambda_.1
$region0: #{_lambda_.1}
  #allocation0 [shape = 'u32[]', space=smem, size = 0x4, offset = 0x4, fixed_abs, tag = 'smem constant byte address 0x4 - core index']
  #allocation1 [shape = 'u32[72,128]{1,0:T(1,128)}', space=vmem, size = 0x9000, scoped, tag = 'internal scratch']
  %s0 = inlined_call_operand.vmem [shape: f32[256,16], index: 0, kind: input, shape index: {}]
  %s1 = inlined_call_operand.vmem [shape: f32[32,16], index: 1, kind: input, shape index: {}]
  %s2 = inlined_call_operand.vmem [shape: f32[32,1], index: 2, kind: input, shape index: {}]
  %s3 = inlined_call_operand.vmem [shape: f32[64,32], index: 3, kind: input, shape index: {}]
  %s4 = inlined_call_operand.vmem [shape: f32[64,1], index: 4, kind: input, shape index: {}]
  %s5 = inlined_call_operand.vmem [shape: f32[32,64], index: 5, kind: input, shape index: {}]
  %s6 = inlined_call_operand.vmem [shape: f32[32,1], index: 6, kind: input, shape index: {}]
  %s7 = inlined_call_operand.vmem [shape: f32[8,32], index: 7, kind: input, shape index: {}]
  %s8 = inlined_call_operand.vmem [shape: f32[8,1], index: 8, kind: input, shape index: {}]
  %s9 = inlined_call_operand.hbm [shape: f32[8,256], index: 9, kind: output, shape index: {}]
  %s10 = sld [smem:[#allocation0]]
  $region46: #{_lambda_.1} parent=0
    _
  %s12 = ssub.s32 1, %s10
  %s13 = scalar_select 0, %s12, %s10
  $region1: #{_lambda_.1} parent=0
    #allocation2 [shape = 'u8[8192]{0}', space=vmem, size = 0x2000, scoped, tag = 'output window, operand 0, single buffered']
    #allocation3 [shape = 's32[1]{0}', space=sflag, size = 0x4, scoped, tag = 'scoped memory for _lambda_.1']
    %14 = vsyncpa [#allocation3], 0
    // Predicated region
    $region2: #{_lambda_.1} parent=1 // pred_check
      _
    $region3: #{_lambda_.1} parent=1 // pred_check_branch
      %16 = sbr.rel (0) target = $region5
    $region4: #{_lambda_.1} parent=1 // pred_region
      _
    $region5: #{_lambda_.1} parent=1 // pred_fallthru
      _
    // Predicated region
    $region6: #{_lambda_.1} parent=1 // pred_check
      _
    $region7: #{_lambda_.1} parent=1 // pred_check_branch
      %18 = sbr.rel (0) target = $region9
    $region8: #{_lambda_.1} parent=1 // pred_region
      _
    $region9: #{_lambda_.1} parent=1 // pred_fallthru
      _
    // Predicated region
    $region10: #{_lambda_.1} parent=1 // pred_check
      _
    $region11: #{_lambda_.1} parent=1 // pred_check_branch
      %20 = sbr.rel (0) target = $region13
    $region12: #{_lambda_.1} parent=1 // pred_region
      _
    $region13: #{_lambda_.1} parent=1 // pred_fallthru
      _
    // Predicated region
    $region14: #{_lambda_.1} parent=1 // pred_check
      _
    $region15: #{_lambda_.1} parent=1 // pred_check_branch
      %22 = sbr.rel (0) target = $region17
    $region16: #{_lambda_.1} parent=1 // pred_region
      _
    $region17: #{_lambda_.1} parent=1 // pred_fallthru
      _
    // Predicated region
    $region18: #{_lambda_.1} parent=1 // pred_check
      _
    $region19: #{_lambda_.1} parent=1 // pred_check_branch
      %24 = sbr.rel (0) target = $region21
    $region20: #{_lambda_.1} parent=1 // pred_region
      _
    $region21: #{_lambda_.1} parent=1 // pred_fallthru
      _
    // Predicated region
    $region22: #{_lambda_.1} parent=1 // pred_check
      _
    $region23: #{_lambda_.1} parent=1 // pred_check_branch
      %26 = sbr.rel (0) target = $region25
    $region24: #{_lambda_.1} parent=1 // pred_region
      _
    $region25: #{_lambda_.1} parent=1 // pred_fallthru
      _
    // Predicated region
    $region26: #{_lambda_.1} parent=1 // pred_check
      _
    $region27: #{_lambda_.1} parent=1 // pred_check_branch
      %28 = sbr.rel (0) target = $region29
    $region28: #{_lambda_.1} parent=1 // pred_region
      _
    $region29: #{_lambda_.1} parent=1 // pred_fallthru
      _
    // Predicated region
    $region30: #{_lambda_.1} parent=1 // pred_check
      _
    $region31: #{_lambda_.1} parent=1 // pred_check_branch
      %30 = sbr.rel (0) target = $region33
    $region32: #{_lambda_.1} parent=1 // pred_region
      _
    $region33: #{_lambda_.1} parent=1 // pred_fallthru
      _
    // Predicated region
    $region34: #{_lambda_.1} parent=1 // pred_check
      _
    $region35: #{_lambda_.1} parent=1 // pred_check_branch
      %32 = sbr.rel (0) target = $region37
    $region36: #{_lambda_.1} parent=1 // pred_region
      _
    $region37: #{_lambda_.1} parent=1 // pred_fallthru
      _
    %v33 = vld [vmem:[%s1] sm:$0xff]
    %v34 = vld [vmem:[%s1 + $0x8] sm:$0xff]
    %v35 = vld [vmem:[%s1 + $0x10] sm:$0xff]
    %v36 = vld [vmem:[%s1 + $0x18] sm:$0xff]
    %v37 = vld [vmem:[%s0] sm:$0xff]
    %v38 = vld [vmem:[%s0 + $0x8] sm:$0xff]
    %v39 = vld [vmem:[%s0 + $0x10] sm:$0xff]
    %v40 = vld [vmem:[%s0 + $0x18] sm:$0xff]
    %v41 = vld [vmem:[%s0 + $0x20] sm:$0xff]
    %v42 = vld [vmem:[%s0 + $0x28] sm:$0xff]
    %v43 = vld [vmem:[%s0 + $0x30] sm:$0xff]
    %v44 = vld [vmem:[%s0 + $0x38] sm:$0xff]
    %v45 = vld [vmem:[%s0 + $0x40] sm:$0xff]
    %v46 = vld [vmem:[%s0 + $0x48] sm:$0xff]
    %v47 = vld [vmem:[%s0 + $0x50] sm:$0xff]
    %v48 = vld [vmem:[%s0 + $0x58] sm:$0xff]
    %v49 = vld [vmem:[%s0 + $0x60] sm:$0xff]
    %v50 = vld [vmem:[%s0 + $0x68] sm:$0xff]
    %v51 = vld [vmem:[%s0 + $0x70] sm:$0xff]
    %v52 = vld [vmem:[%s0 + $0x78] sm:$0xff]
    %v53 = vld [vmem:[%s0 + $0x80] sm:$0xff]
    %v54 = vld [vmem:[%s0 + $0x88] sm:$0xff]
    %v55 = vld [vmem:[%s0 + $0x90] sm:$0xff]
    %v56 = vld [vmem:[%s0 + $0x98] sm:$0xff]
    %v57 = vld [vmem:[%s0 + $0xa0] sm:$0xff]
    %v58 = vld [vmem:[%s0 + $0xa8] sm:$0xff]
    %v59 = vld [vmem:[%s0 + $0xb0] sm:$0xff]
    %v60 = vld [vmem:[%s0 + $0xb8] sm:$0xff]
    %v61 = vld [vmem:[%s0 + $0xc0] sm:$0xff]
    %v62 = vld [vmem:[%s0 + $0xc8] sm:$0xff]
    %v63 = vld [vmem:[%s0 + $0xd0] sm:$0xff]
    %v64 = vld [vmem:[%s0 + $0xd8] sm:$0xff]
    %v65 = vld [vmem:[%s0 + $0xe0] sm:$0xff]
    %v66 = vld [vmem:[%s0 + $0xe8] sm:$0xff]
    %v67 = vld [vmem:[%s0 + $0xf0] sm:$0xff]
    %v68 = vld [vmem:[%s0 + $0xf8] sm:$0xff]
    %v69 = vld [vmem:[%s2] sm:$0xff]
    %v70 = vld [vmem:[%s2 + $0x8] sm:$0xff]
    %v71 = vld [vmem:[%s2 + $0x10] sm:$0xff]
    %v72 = vld [vmem:[%s2 + $0x18] sm:$0xff]
    %74 = vset.pattern.permute.xlu0 0
    %75 = vperm.xlu0 %74, %v69
    %v76 = vpop.permute.xlu0 %75
    %79 = vset.pattern.permute.xlu0 0
    %80 = vperm.xlu0 %79, %v70
    %v81 = vpop.permute.xlu0 %80
    %84 = vset.pattern.permute.xlu0 0
    %85 = vperm.xlu0 %84, %v71
    %v86 = vpop.permute.xlu0 %85
    %89 = vset.pattern.permute.xlu0 0
    %90 = vperm.xlu0 %89, %v72
    %v91 = vpop.permute.xlu0 %90
    %vm93 = vcmask 130048
    %v95 = vsel %vm93, %v33, 0
    %v98 = vsel %vm93, %v34, 0
    %v101 = vsel %vm93, %v35, 0
    %v104 = vsel %vm93, %v36, 0
    %v107 = vsel %vm93, %v37, 0
    %v110 = vsel %vm93, %v38, 0
    %v113 = vsel %vm93, %v39, 0
    %v116 = vsel %vm93, %v40, 0
    %v119 = vsel %vm93, %v41, 0
    %v122 = vsel %vm93, %v42, 0
    %v125 = vsel %vm93, %v43, 0
    %v128 = vsel %vm93, %v44, 0
    %v131 = vsel %vm93, %v45, 0
    %v134 = vsel %vm93, %v46, 0
    %v137 = vsel %vm93, %v47, 0
    %v140 = vsel %vm93, %v48, 0
    %v143 = vsel %vm93, %v49, 0
    %v146 = vsel %vm93, %v50, 0
    %v149 = vsel %vm93, %v51, 0
    %v152 = vsel %vm93, %v52, 0
    %v155 = vsel %vm93, %v53, 0
    %v158 = vsel %vm93, %v54, 0
    %v161 = vsel %vm93, %v55, 0
    %v164 = vsel %vm93, %v56, 0
    %v167 = vsel %vm93, %v57, 0
    %v170 = vsel %vm93, %v58, 0
    %v173 = vsel %vm93, %v59, 0
    %v176 = vsel %vm93, %v60, 0
    %v179 = vsel %vm93, %v61, 0
    %v182 = vsel %vm93, %v62, 0
    %v185 = vsel %vm93, %v63, 0
    %v188 = vsel %vm93, %v64, 0
    %v191 = vsel %vm93, %v65, 0
    %v194 = vsel %vm93, %v66, 0
    %v197 = vsel %vm93, %v67, 0
    %v200 = vsel %vm93, %v68, 0
    %202 = vmatpush.xpose.msra.mxu0 %v152
    %203 = vmatpush.xpose.msra.mxu0 %v149
    %204 = vmatpush.xpose.msra.mxu0 %v146
    %205 = vmatpush.xpose.msra.mxu0 %v143
    %206 = vmatpush.xpose.msra.mxu0 %v140
    %207 = vmatpush.xpose.msra.mxu0 %v137
    %208 = vmatpush.xpose.msra.mxu0 %v134
    %209 = vmatpush.xpose.msra.mxu0 %v131
    %210 = vmatpush.xpose.msra.mxu0 %v128
    %211 = vmatpush.xpose.msra.mxu0 %v125
    %212 = vmatpush.xpose.msra.mxu0 %v122
    %213 = vmatpush.xpose.msra.mxu0 %v119
    %214 = vmatpush.xpose.msra.mxu0 %v116
    %215 = vmatpush.xpose.msra.mxu0 %v113
    %216 = vmatpush.xpose.msra.mxu0 %v110
    %217 = vmatpush.xpose.msra.mxu0 %v107
    %218 = vmatmul.f32.gmra.mxu0 %v95
    %v219 = vpop.f32.mrf.mxu0
    %v220 = vadd.f32 %v76, %v219
    %221 = vmatmul.f32.gmra.mxu0 %v98
    %v222 = vpop.f32.mrf.mxu0
    %v223 = vadd.f32 %v81, %v222
    %224 = vmatmul.f32.gmra.mxu0 %v101
    %v225 = vpop.f32.mrf.mxu0
    %v226 = vadd.f32 %v86, %v225
    %227 = vmatmul.f32.gmra.mxu0 %v104
    %v228 = vpop.f32.mrf.mxu0
    %v229 = vadd.f32 %v91, %v228
    %230 = vdwg.mxu0
    %231 = vmatpush.xpose.msra.mxu0 %v200
    %232 = vmatpush.xpose.msra.mxu0 %v197
    %233 = vmatpush.xpose.msra.mxu0 %v194
    %234 = vmatpush.xpose.msra.mxu0 %v191
    %235 = vmatpush.xpose.msra.mxu0 %v188
    %236 = vmatpush.xpose.msra.mxu0 %v185
    %237 = vmatpush.xpose.msra.mxu0 %v182
    %238 = vmatpush.xpose.msra.mxu0 %v179
    %239 = vmatpush.xpose.msra.mxu0 %v176
    %240 = vmatpush.xpose.msra.mxu0 %v173
    %241 = vmatpush.xpose.msra.mxu0 %v170
    %242 = vmatpush.xpose.msra.mxu0 %v167
    %243 = vmatpush.xpose.msra.mxu0 %v164
    %244 = vmatpush.xpose.msra.mxu0 %v161
    %245 = vmatpush.xpose.msra.mxu0 %v158
    %246 = vmatpush.xpose.msra.mxu0 %v155
    %247 = vmatmul.f32.gmra.mxu0 %v95
    %v248 = vpop.f32.mrf.mxu0
    %v249 = vadd.f32 %v76, %v248
    %250 = vmatmul.f32.gmra.mxu0 %v98
    %v251 = vpop.f32.mrf.mxu0
    %v252 = vadd.f32 %v81, %v251
    %253 = vmatmul.f32.gmra.mxu0 %v101
    %v254 = vpop.f32.mrf.mxu0
    %v255 = vadd.f32 %v86, %v254
    %256 = vmatmul.f32.gmra.mxu0 %v104
    %v257 = vpop.f32.mrf.mxu0
    %v258 = vadd.f32 %v91, %v257
    %259 = vdwg.mxu0
    %vm260 = vcmp.gt.f32.partialorder %v220, 0.0
    %vm261 = vcmp.gt.f32.partialorder %v249, 0.0
    %vm262 = vcmp.gt.f32.partialorder %v223, 0.0
    %vm263 = vcmp.gt.f32.partialorder %v252, 0.0
    %vm264 = vcmp.gt.f32.partialorder %v226, 0.0
    %vm265 = vcmp.gt.f32.partialorder %v255, 0.0
    %vm266 = vcmp.gt.f32.partialorder %v229, 0.0
    %vm267 = vcmp.gt.f32.partialorder %v258, 0.0
    %v268 = vmul.f32 %v220, 0.02
    %v269 = vmul.f32 %v249, 0.02
    %v270 = vmul.f32 %v223, 0.02
    %v271 = vmul.f32 %v252, 0.02
    %v272 = vmul.f32 %v226, 0.02
    %v273 = vmul.f32 %v255, 0.02
    %v274 = vmul.f32 %v229, 0.02
    %v275 = vmul.f32 %v258, 0.02
    %v276 = vsel %vm260, %v220, %v268
    %v277 = vsel %vm261, %v249, %v269
    %v278 = vsel %vm262, %v223, %v270
    %v279 = vsel %vm263, %v252, %v271
    %v280 = vsel %vm264, %v226, %v272
    %v281 = vsel %vm265, %v255, %v273
    %v282 = vsel %vm266, %v229, %v274
    %v283 = vsel %vm267, %v258, %v275
    %v284 = vld [vmem:[%s3] sm:$0xff]
    %v285 = vld [vmem:[%s3 + $0x8] sm:$0xff]
    %v286 = vld [vmem:[%s3 + $0x10] sm:$0xff]
    %v287 = vld [vmem:[%s3 + $0x18] sm:$0xff]
    %v288 = vld [vmem:[%s3 + $0x20] sm:$0xff]
    %v289 = vld [vmem:[%s3 + $0x28] sm:$0xff]
    %v290 = vld [vmem:[%s3 + $0x30] sm:$0xff]
    %v291 = vld [vmem:[%s3 + $0x38] sm:$0xff]
    %v292 = vld [vmem:[%s4] sm:$0xff]
    %v293 = vld [vmem:[%s4 + $0x8] sm:$0xff]
    %v294 = vld [vmem:[%s4 + $0x10] sm:$0xff]
    %v295 = vld [vmem:[%s4 + $0x18] sm:$0xff]
    %v296 = vld [vmem:[%s4 + $0x20] sm:$0xff]
    %v297 = vld [vmem:[%s4 + $0x28] sm:$0xff]
    %v298 = vld [vmem:[%s4 + $0x30] sm:$0xff]
    %v299 = vld [vmem:[%s4 + $0x38] sm:$0xff]
    %301 = vset.pattern.permute.xlu0 0
    %302 = vperm.xlu0 %301, %v292
    %v303 = vpop.permute.xlu0 %302
    %306 = vset.pattern.permute.xlu0 0
    %307 = vperm.xlu0 %306, %v293
    %v308 = vpop.permute.xlu0 %307
    %311 = vset.pattern.permute.xlu0 0
    %312 = vperm.xlu0 %311, %v294
    %v313 = vpop.permute.xlu0 %312
    %316 = vset.pattern.permute.xlu0 0
    %317 = vperm.xlu0 %316, %v295
    %v318 = vpop.permute.xlu0 %317
    %321 = vset.pattern.permute.xlu0 0
    %322 = vperm.xlu0 %321, %v296
    %v323 = vpop.permute.xlu0 %322
    %326 = vset.pattern.permute.xlu0 0
    %327 = vperm.xlu0 %326, %v297
    %v328 = vpop.permute.xlu0 %327
    %331 = vset.pattern.permute.xlu0 0
    %332 = vperm.xlu0 %331, %v298
    %v333 = vpop.permute.xlu0 %332
    %336 = vset.pattern.permute.xlu0 0
    %337 = vperm.xlu0 %336, %v299
    %v338 = vpop.permute.xlu0 %337
    %vm340 = vcmask 261120
    %v342 = vsel %vm340, %v284, 0
    %v345 = vsel %vm340, %v285, 0
    %v348 = vsel %vm340, %v286, 0
    %v351 = vsel %vm340, %v287, 0
    %v354 = vsel %vm340, %v288, 0
    %v357 = vsel %vm340, %v289, 0
    %v360 = vsel %vm340, %v290, 0
    %v363 = vsel %vm340, %v291, 0
    %365 = vmatpush.msra.mxu0 0.0
    %366 = vmatpush.msra.mxu0 0.0
    %367 = vmatpush.msra.mxu0 0.0
    %368 = vmatpush.msra.mxu0 0.0
    %369 = vmatpush.msra.mxu0 0.0
    %370 = vmatpush.msra.mxu0 0.0
    %371 = vmatpush.msra.mxu0 0.0
    %372 = vmatpush.msra.mxu0 0.0
    %373 = vmatpush.msra.mxu0 0.0
    %374 = vmatpush.msra.mxu0 0.0
    %375 = vmatpush.msra.mxu0 0.0
    %376 = vmatpush.msra.mxu0 0.0
    %377 = vmatpush.msra.mxu0 %v282
    %378 = vmatpush.msra.mxu0 %v280
    %379 = vmatpush.msra.mxu0 %v278
    %380 = vmatpush.msra.mxu0 %v276
    %381 = vmatmul.f32.gmra.mxu0 %v342
    %v382 = vpop.f32.mrf.mxu0
    %v383 = vadd.f32 %v303, %v382
    %384 = vmatmul.f32.gmra.mxu0 %v345
    %v385 = vpop.f32.mrf.mxu0
    %v386 = vadd.f32 %v308, %v385
    %387 = vmatmul.f32.gmra.mxu0 %v348
    %v388 = vpop.f32.mrf.mxu0
    %v389 = vadd.f32 %v313, %v388
    %390 = vmatmul.f32.gmra.mxu0 %v351
    %v391 = vpop.f32.mrf.mxu0
    %v392 = vadd.f32 %v318, %v391
    %393 = vmatmul.f32.gmra.mxu0 %v354
    %v394 = vpop.f32.mrf.mxu0
    %v395 = vadd.f32 %v323, %v394
    %396 = vmatmul.f32.gmra.mxu0 %v357
    %v397 = vpop.f32.mrf.mxu0
    %v398 = vadd.f32 %v328, %v397
    %399 = vmatmul.f32.gmra.mxu0 %v360
    %v400 = vpop.f32.mrf.mxu0
    %v401 = vadd.f32 %v333, %v400
    %402 = vmatmul.f32.gmra.mxu0 %v363
    %v403 = vpop.f32.mrf.mxu0
    %v404 = vadd.f32 %v338, %v403
    %405 = vdwg.mxu0
    %406 = vmatpush.msra.mxu0 0.0
    %407 = vmatpush.msra.mxu0 0.0
    %408 = vmatpush.msra.mxu0 0.0
    %409 = vmatpush.msra.mxu0 0.0
    %410 = vmatpush.msra.mxu0 0.0
    %411 = vmatpush.msra.mxu0 0.0
    %412 = vmatpush.msra.mxu0 0.0
    %413 = vmatpush.msra.mxu0 0.0
    %414 = vmatpush.msra.mxu0 0.0
    %415 = vmatpush.msra.mxu0 0.0
    %416 = vmatpush.msra.mxu0 0.0
    %417 = vmatpush.msra.mxu0 0.0
    %418 = vmatpush.msra.mxu0 %v283
    %419 = vmatpush.msra.mxu0 %v281
    %420 = vmatpush.msra.mxu0 %v279
    %421 = vmatpush.msra.mxu0 %v277
    %422 = vmatmul.f32.gmra.mxu0 %v342
    %v423 = vpop.f32.mrf.mxu0
    %v424 = vadd.f32 %v303, %v423
    %425 = vmatmul.f32.gmra.mxu0 %v345
    %v426 = vpop.f32.mrf.mxu0
    %v427 = vadd.f32 %v308, %v426
    %428 = vmatmul.f32.gmra.mxu0 %v348
    %v429 = vpop.f32.mrf.mxu0
    %v430 = vadd.f32 %v313, %v429
    %431 = vmatmul.f32.gmra.mxu0 %v351
    %v432 = vpop.f32.mrf.mxu0
    %v433 = vadd.f32 %v318, %v432
    %434 = vmatmul.f32.gmra.mxu0 %v354
    %v435 = vpop.f32.mrf.mxu0
    %v436 = vadd.f32 %v323, %v435
    %437 = vmatmul.f32.gmra.mxu0 %v357
    %v438 = vpop.f32.mrf.mxu0
    %v439 = vadd.f32 %v328, %v438
    %440 = vmatmul.f32.gmra.mxu0 %v360
    %v441 = vpop.f32.mrf.mxu0
    %v442 = vadd.f32 %v333, %v441
    %443 = vmatmul.f32.gmra.mxu0 %v363
    %v444 = vpop.f32.mrf.mxu0
    %v445 = vadd.f32 %v338, %v444
    %446 = vdwg.mxu0
    %vm447 = vcmp.gt.f32.partialorder %v383, 0.0
    %vm448 = vcmp.gt.f32.partialorder %v424, 0.0
    %vm449 = vcmp.gt.f32.partialorder %v386, 0.0
    %vm450 = vcmp.gt.f32.partialorder %v427, 0.0
    %vm451 = vcmp.gt.f32.partialorder %v389, 0.0
    %vm452 = vcmp.gt.f32.partialorder %v430, 0.0
    %vm453 = vcmp.gt.f32.partialorder %v392, 0.0
    %vm454 = vcmp.gt.f32.partialorder %v433, 0.0
    %vm455 = vcmp.gt.f32.partialorder %v395, 0.0
    %vm456 = vcmp.gt.f32.partialorder %v436, 0.0
    %vm457 = vcmp.gt.f32.partialorder %v398, 0.0
    %vm458 = vcmp.gt.f32.partialorder %v439, 0.0
    %vm459 = vcmp.gt.f32.partialorder %v401, 0.0
    %vm460 = vcmp.gt.f32.partialorder %v442, 0.0
    %vm461 = vcmp.gt.f32.partialorder %v404, 0.0
    %vm462 = vcmp.gt.f32.partialorder %v445, 0.0
    %v463 = vmul.f32 %v383, 0.02
    %v464 = vmul.f32 %v424, 0.02
    %v465 = vmul.f32 %v386, 0.02
    %v466 = vmul.f32 %v427, 0.02
    %v467 = vmul.f32 %v389, 0.02
    %v468 = vmul.f32 %v430, 0.02
    %v469 = vmul.f32 %v392, 0.02
    %v470 = vmul.f32 %v433, 0.02
    %v471 = vmul.f32 %v395, 0.02
    %v472 = vmul.f32 %v436, 0.02
    %v473 = vmul.f32 %v398, 0.02
    %v474 = vmul.f32 %v439, 0.02
    %v475 = vmul.f32 %v401, 0.02
    %v476 = vmul.f32 %v442, 0.02
    %v477 = vmul.f32 %v404, 0.02
    %v478 = vmul.f32 %v445, 0.02
    %v479 = vsel %vm447, %v383, %v463
    %v480 = vsel %vm448, %v424, %v464
    %v481 = vsel %vm449, %v386, %v465
    %v482 = vsel %vm450, %v427, %v466
    %v483 = vsel %vm451, %v389, %v467
    %v484 = vsel %vm452, %v430, %v468
    %v485 = vsel %vm453, %v392, %v469
    %v486 = vsel %vm454, %v433, %v470
    %v487 = vsel %vm455, %v395, %v471
    %v488 = vsel %vm456, %v436, %v472
    %v489 = vsel %vm457, %v398, %v473
    %v490 = vsel %vm458, %v439, %v474
    %v491 = vsel %vm459, %v401, %v475
    %v492 = vsel %vm460, %v442, %v476
    %v493 = vsel %vm461, %v404, %v477
    %v494 = vsel %vm462, %v445, %v478
    %v495 = vld [vmem:[%s5] sm:$0xff]
    %v496 = vld [vmem:[%s5 + $0x8] sm:$0xff]
    %v497 = vld [vmem:[%s5 + $0x10] sm:$0xff]
    %v498 = vld [vmem:[%s5 + $0x18] sm:$0xff]
    %v499 = vld [vmem:[%s6] sm:$0xff]
    %v500 = vld [vmem:[%s6 + $0x8] sm:$0xff]
    %v501 = vld [vmem:[%s6 + $0x10] sm:$0xff]
    %v502 = vld [vmem:[%s6 + $0x18] sm:$0xff]
    %504 = vset.pattern.permute.xlu0 0
    %505 = vperm.xlu0 %504, %v499
    %v506 = vpop.permute.xlu0 %505
    %509 = vset.pattern.permute.xlu0 0
    %510 = vperm.xlu0 %509, %v500
    %v511 = vpop.permute.xlu0 %510
    %514 = vset.pattern.permute.xlu0 0
    %515 = vperm.xlu0 %514, %v501
    %v516 = vpop.permute.xlu0 %515
    %519 = vset.pattern.permute.xlu0 0
    %520 = vperm.xlu0 %519, %v502
    %v521 = vpop.permute.xlu0 %520
    %vm523 = vcmask 523264
    %v525 = vsel %vm523, %v495, 0
    %v528 = vsel %vm523, %v496, 0
    %v531 = vsel %vm523, %v497, 0
    %v534 = vsel %vm523, %v498, 0
    %536 = vmatpush.msra.mxu0 0.0
    %537 = vmatpush.msra.mxu0 0.0
    %538 = vmatpush.msra.mxu0 0.0
    %539 = vmatpush.msra.mxu0 0.0
    %540 = vmatpush.msra.mxu0 0.0
    %541 = vmatpush.msra.mxu0 0.0
    %542 = vmatpush.msra.mxu0 0.0
    %543 = vmatpush.msra.mxu0 0.0
    %544 = vmatpush.msra.mxu0 %v493
    %545 = vmatpush.msra.mxu0 %v491
    %546 = vmatpush.msra.mxu0 %v489
    %547 = vmatpush.msra.mxu0 %v487
    %548 = vmatpush.msra.mxu0 %v485
    %549 = vmatpush.msra.mxu0 %v483
    %550 = vmatpush.msra.mxu0 %v481
    %551 = vmatpush.msra.mxu0 %v479
    %552 = vmatmul.f32.gmra.mxu0 %v525
    %v553 = vpop.f32.mrf.mxu0
    %v554 = vadd.f32 %v506, %v553
    %555 = vmatmul.f32.gmra.mxu0 %v528
    %v556 = vpop.f32.mrf.mxu0
    %v557 = vadd.f32 %v511, %v556
    %558 = vmatmul.f32.gmra.mxu0 %v531
    %v559 = vpop.f32.mrf.mxu0
    %v560 = vadd.f32 %v516, %v559
    %561 = vmatmul.f32.gmra.mxu0 %v534
    %v562 = vpop.f32.mrf.mxu0
    %v563 = vadd.f32 %v521, %v562
    %564 = vdwg.mxu0
    %565 = vmatpush.msra.mxu0 0.0
    %566 = vmatpush.msra.mxu0 0.0
    %567 = vmatpush.msra.mxu0 0.0
    %568 = vmatpush.msra.mxu0 0.0
    %569 = vmatpush.msra.mxu0 0.0
    %570 = vmatpush.msra.mxu0 0.0
    %571 = vmatpush.msra.mxu0 0.0
    %572 = vmatpush.msra.mxu0 0.0
    %573 = vmatpush.msra.mxu0 %v494
    %574 = vmatpush.msra.mxu0 %v492
    %575 = vmatpush.msra.mxu0 %v490
    %576 = vmatpush.msra.mxu0 %v488
    %577 = vmatpush.msra.mxu0 %v486
    %578 = vmatpush.msra.mxu0 %v484
    %579 = vmatpush.msra.mxu0 %v482
    %580 = vmatpush.msra.mxu0 %v480
    %581 = vmatmul.f32.gmra.mxu0 %v525
    %v582 = vpop.f32.mrf.mxu0
    %v583 = vadd.f32 %v506, %v582
    %584 = vmatmul.f32.gmra.mxu0 %v528
    %v585 = vpop.f32.mrf.mxu0
    %v586 = vadd.f32 %v511, %v585
    %587 = vmatmul.f32.gmra.mxu0 %v531
    %v588 = vpop.f32.mrf.mxu0
    %v589 = vadd.f32 %v516, %v588
    %590 = vmatmul.f32.gmra.mxu0 %v534
    %v591 = vpop.f32.mrf.mxu0
    %v592 = vadd.f32 %v521, %v591
    %593 = vdwg.mxu0
    %vm594 = vcmp.gt.f32.partialorder %v554, 0.0
    %vm595 = vcmp.gt.f32.partialorder %v583, 0.0
    %vm596 = vcmp.gt.f32.partialorder %v557, 0.0
    %vm597 = vcmp.gt.f32.partialorder %v586, 0.0
    %vm598 = vcmp.gt.f32.partialorder %v560, 0.0
    %vm599 = vcmp.gt.f32.partialorder %v589, 0.0
    %vm600 = vcmp.gt.f32.partialorder %v563, 0.0
    %vm601 = vcmp.gt.f32.partialorder %v592, 0.0
    %v602 = vmul.f32 %v554, 0.02
    %v603 = vmul.f32 %v583, 0.02
    %v604 = vmul.f32 %v557, 0.02
    %v605 = vmul.f32 %v586, 0.02
    %v606 = vmul.f32 %v560, 0.02
    %v607 = vmul.f32 %v589, 0.02
    %v608 = vmul.f32 %v563, 0.02
    %v609 = vmul.f32 %v592, 0.02
    %v610 = vsel %vm594, %v554, %v602
    %v611 = vsel %vm595, %v583, %v603
    %v612 = vsel %vm596, %v557, %v604
    %v613 = vsel %vm597, %v586, %v605
    %v614 = vsel %vm598, %v560, %v606
    %v615 = vsel %vm599, %v589, %v607
    %v616 = vsel %vm600, %v563, %v608
    %v617 = vsel %vm601, %v592, %v609
    %v618 = vld [vmem:[%s7] sm:$0xff]
    %v619 = vld [vmem:[%s8] sm:$0xff]
    %621 = vset.pattern.permute.xlu0 0
    %622 = vperm.xlu0 %621, %v619
    %v623 = vpop.permute.xlu0 %622
    %v626 = vsel %vm340, %v618, 0
    %628 = vmatpush.msra.mxu0 0.0
    %629 = vmatpush.msra.mxu0 0.0
    %630 = vmatpush.msra.mxu0 0.0
    %631 = vmatpush.msra.mxu0 0.0
    %632 = vmatpush.msra.mxu0 0.0
    %633 = vmatpush.msra.mxu0 0.0
    %634 = vmatpush.msra.mxu0 0.0
    %635 = vmatpush.msra.mxu0 0.0
    %636 = vmatpush.msra.mxu0 0.0
    %637 = vmatpush.msra.mxu0 0.0
    %638 = vmatpush.msra.mxu0 0.0
    %639 = vmatpush.msra.mxu0 0.0
    %640 = vmatpush.msra.mxu0 %v616
    %641 = vmatpush.msra.mxu0 %v614
    %642 = vmatpush.msra.mxu0 %v612
    %643 = vmatpush.msra.mxu0 %v610
    %644 = vmatmul.f32.gmra.mxu0 %v626
    %v645 = vpop.f32.mrf.mxu0
    %v646 = vadd.f32 %v623, %v645
    %647 = vdwg.mxu0
    %648 = vmatpush.msra.mxu0 0.0
    %649 = vmatpush.msra.mxu0 0.0
    %650 = vmatpush.msra.mxu0 0.0
    %651 = vmatpush.msra.mxu0 0.0
    %652 = vmatpush.msra.mxu0 0.0
    %653 = vmatpush.msra.mxu0 0.0
    %654 = vmatpush.msra.mxu0 0.0
    %655 = vmatpush.msra.mxu0 0.0
    %656 = vmatpush.msra.mxu0 0.0
    %657 = vmatpush.msra.mxu0 0.0
    %658 = vmatpush.msra.mxu0 0.0
    %659 = vmatpush.msra.mxu0 0.0
    %660 = vmatpush.msra.mxu0 %v617
    %661 = vmatpush.msra.mxu0 %v615
    %662 = vmatpush.msra.mxu0 %v613
    %663 = vmatpush.msra.mxu0 %v611
    %664 = vmatmul.f32.gmra.mxu0 %v626
    %v665 = vpop.f32.mrf.mxu0
    %v666 = vadd.f32 %v623, %v665
    %667 = vdwg.mxu0
    %668 = vst [vmem:[#allocation2] sm:$0xff] %v646
    %669 = vst [vmem:[#allocation2 + $0x8] sm:$0xff] %v666
    // Predicated region
    $region38: #{_lambda_.1} parent=1 // pred_check
      _
    $region39: #{_lambda_.1} parent=1 // pred_check_branch
      %671 = sbr.rel (0) target = $region41
    $region40: #{_lambda_.1} parent=1 // pred_region
      %673 = vsyncadd [#allocation3], 0
      %s675 = sshll.u32 [#allocation2], 4
      %s676 = int_to_ptr.vmem [resolvable:$true] %s675
      %s677 = sshll.u32 %s9, 4
      %s678 = int_to_ptr.hbm [resolvable:$true] %s677
      %680 = dma.vmem_to_hbm [thread:$0]  %s676, 256, %s678, [#allocation3]
    $region41: #{_lambda_.1} parent=1 // pred_fallthru
      _
    // Predicated region
    $region42: #{_lambda_.1} parent=1 // pred_check
      _
    $region43: #{_lambda_.1} parent=1 // pred_check_branch
      %682 = sbr.rel (0) target = $region45
    $region44: #{_lambda_.1} parent=1 // pred_region
      %684 = dma.done [#allocation3], 256
    $region45: #{_lambda_.1} parent=1 // pred_fallthru
      _
    %685 = vsyncpa [#allocation3], 1

</llo_original>
